<compile_context>
chip_gen: v5e
topology: v5e:2x2
jax: 0.10.0
libtpu: 0.0.40
codegen_flags: <defaults>
</compile_context>

<pallas_src>
import jax
import jax.numpy as jnp
from jax import lax
from jax.experimental import pallas as pl
from jax.experimental.pallas import tpu as pltpu


def _round_up(x, m):
    return ((x + m - 1) // m) * m


def _cdiv(a, b):
    return (a + b - 1) // b


def prepare_qa_params(weight, bias, compute_dtype=None):
    """One-time parameter prep (hoist to module init, not per forward call).

    weight: [num_classes, input_size]  (PyTorch nn.Linear layout; NOT transposed)
    bias:   [num_classes]

    Returns (w_padded [Np, K], bias_row [1, Np] f32, num_classes) where
    Np = round_up(num_classes, 128) so output stores are lane-dense.
    """
    N, K = weight.shape
    Np = _round_up(N, 128)
    w = weight if compute_dtype is None else weight.astype(compute_dtype)
    b = bias.astype(jnp.float32)
    if Np != N:
        w = jnp.pad(w, ((0, Np - N), (0, 0)))
        b = jnp.pad(b, (0, Np - N))
    return w, b.reshape(1, Np), N


def _simple_kernel(x_ref, w_ref, b_ref, o_ref):
    # Single K block: contract x[tm, K] with w[tn, K] on the K axis (trans_b),
    # add bias in f32, downcast exactly once at the store.
    acc = lax.dot_general(
        x_ref[...], w_ref[...],
        dimension_numbers=(((1,), (1,)), ((), ())),
        preferred_element_type=jnp.float32)
    o_ref[...] = (acc + b_ref[...].astype(jnp.float32)).astype(o_ref.dtype)


def _make_accum_kernel(K, tk, nk):
    """K-tiled kernel with an f32 VMEM accumulator (K axis last, 'arbitrary')."""
    k_rem = K - (nk - 1) * tk  # valid columns of the last K block (static)

    def kernel(x_ref, w_ref, b_ref, o_ref, acc_ref):
        k = pl.program_id(2)
        nk_ = pl.num_programs(2)

        @pl.when(k == 0)
        def _():
            acc_ref[...] = jnp.zeros_like(acc_ref)

        x_blk = x_ref[...]
        w_blk = w_ref[...]
        if k_rem != tk:
            # Ragged last K block: mask OOB (garbage) columns of both operands
            # so they cannot pollute the accumulator.
            valid = jnp.where(k == nk_ - 1, k_rem, tk)
            colx = lax.broadcasted_iota(jnp.int32, x_blk.shape, 1)
            colw = lax.broadcasted_iota(jnp.int32, w_blk.shape, 1)
            x_blk = jnp.where(colx < valid, x_blk, jnp.zeros_like(x_blk))
            w_blk = jnp.where(colw < valid, w_blk, jnp.zeros_like(w_blk))

        acc_ref[...] += lax.dot_general(
            x_blk, w_blk,
            dimension_numbers=(((1,), (1,)), ((), ())),
            preferred_element_type=jnp.float32)

        @pl.when(k == nk_ - 1)
        def _():
            o_ref[...] = (acc_ref[...] + b_ref[...].astype(jnp.float32)
                          ).astype(o_ref.dtype)

    return kernel


def qa_classifier_forward_prepared(x, w_padded, bias_row, num_classes, *,
                                   tm=256, tn=512, tk=1024, out_dtype=None):
    """Pallas path. Takes parameters from prepare_qa_params.

    x:         [..., input_size]
    w_padded:  [Np, input_size]   (Np = lane-padded num_classes, native layout)
    bias_row:  [1, Np] float32
    returns    [..., num_classes]
    """
    *lead, K = x.shape
    Np, K2 = w_padded.shape
    assert K == K2, (K, K2)
    N = num_classes
    assert N <= Np

    out_dtype = out_dtype or x.dtype
    out_itemsize = jnp.dtype(out_dtype).itemsize

    # Flatten all leading dims -> one big M so a single pallas_call covers every
    # timestep / batch entry (amortizes per-grid-step + launch overhead).
    x2 = x.reshape(-1, K)
    if x2.dtype != w_padded.dtype:
        x2 = x2.astype(w_padded.dtype)   # compute dtype follows prepared weights
    M = x2.shape[0]
    itemsize = jnp.dtype(x2.dtype).itemsize

    # Sublane alignment of the M tile depends on the packed vreg tile of the
    # compute dtype: 8 rows for f32, 16 for bf16, 32 for int8/fp8.
    sub = max(8, 32 // max(itemsize, 1))

    tm = min(tm, _round_up(M, sub))
    tn = min(tn, Np)                      # Np is a multiple of 128 -> lane-dense
    # v7x megacore: make sure there are >= 2 M tiles to shard when M is worth it.
    if M >= 512 and _cdiv(M, tm) < 2:
        tm = _round_up(_cdiv(M, 2), sub)

    # K blocking: full-extent when it comfortably fits VMEM (common QA-head
    # case -> weight stays resident, bias add happens once), else tile K and
    # accumulate in f32 scratch so VMEM stays bounded (v7x: 64 MiB physical).
    if K <= max(tk, 2048):
        tk_eff, nk = K, 1
    else:
        tk_eff = tk
        nk = _cdiv(K, tk_eff)

    ni = _cdiv(M, tm)
    nj = _cdiv(Np, tn)
    grid = (nj, ni, nk)  # N outer, M middle, K inner ("arbitrary")

    if nk == 1:
        kernel = _simple_kernel
        scratch = []
    else:
        kernel = _make_accum_kernel(K, tk_eff, nk)
        scratch = [pltpu.VMEM((tm, tn), jnp.float32)]

    # Explicit VMEM budget sized from the actual tiles (double-buffered inputs
    # and output + accumulator), so v5e's 16 MiB scoped default never bites and
    # we stay inside v7x's 64 MiB physical VMEM.
    vmem_bytes = (2 * (tm * tk_eff + tn * tk_eff) * itemsize
                  + 2 * tm * tn * out_itemsize
                  + 2 * tn * 4
                  + (tm * tn * 4 if nk > 1 else 0))
    vmem_limit = int(min(max(2 * vmem_bytes, 16 << 20), 64 << 20))

    # Accurate cost hint: real element sizes, and the weight/x re-stream factors
    # implied by the grid order (weight read once when nk == 1, ni times
    # otherwise; x read once per N tile).
    w_reads = 1 if nk == 1 else ni
    cost = pl.CostEstimate(
        flops=2 * M * K * Np,
        transcendentals=0,
        bytes_accessed=int(nj * M * K * itemsize
                           + w_reads * Np * K * itemsize
                           + M * Np * out_itemsize
                           + nj * Np * 4))

    out_padded = pl.pallas_call(
        kernel,
        out_shape=jax.ShapeDtypeStruct((M, Np), out_dtype),
        grid_spec=pltpu.PrefetchScalarGridSpec(
            num_scalar_prefetch=0,
            grid=grid,
            in_specs=[
                # x tile: rows over i, K over k (full-extent when nk == 1).
                pl.BlockSpec((tm, tk_eff), lambda j, i, k: (i, k)),
                # weight tile in native [N, K] layout: rows (classes) over j,
                # K over k. With nk == 1 the index is constant across the whole
                # inner M sweep -> resident, DMA'd from HBM exactly once.
                pl.BlockSpec((tn, tk_eff), lambda j, i, k: (j, k)),
                # bias row: columns over j.
                pl.BlockSpec((1, tn), lambda j, i, k: (0, j)),
            ],
            out_specs=pl.BlockSpec((tm, tn), lambda j, i, k: (i, j)),
            scratch_shapes=scratch),
        compiler_params=pltpu.CompilerParams(
            dimension_semantics=("parallel", "parallel", "arbitrary"),
            vmem_limit_bytes=vmem_limit),
        cost_estimate=cost,
    )(x2, w_padded, bias_row)

    out = out_padded if Np == N else out_padded[:, :N]
    return out.reshape(*lead, N)


def qa_classifier_forward(x, weight, bias, *, compute_dtype=None,
                          min_rows_for_pallas=1024, **tile_kwargs):
    """Convenience wrapper matching nn.Linear semantics: x @ W.T + b.

    For tiny batches the pallas_call fixed overhead (launch + DMA round trip)
    dwarfs the few MXU cycles of work, so below `min_rows_for_pallas` rows we
    let XLA fuse the plain expression instead.
    """
    *lead, K = x.shape
    M = 1
    for d in lead:
        M *= d
    if M < min_rows_for_pallas:
        return (jnp.dot(x, weight.T) + bias).astype(x.dtype)
    w_p, b_p, n_cls = prepare_qa_params(weight, bias, compute_dtype)
    return qa_classifier_forward_prepared(x, w_p, b_p, n_cls, **tile_kwargs)


if __name__ == "__main__":
    # TODO(synk): vocab_path pickle load has no Pallas equivalent; num_classes
    # is fixed in-script (would normally be len(vocab['answer'])).
    timesteps = 4
    batch = 8
    input_size = 32
    num_classes = 16

    key = jax.random.PRNGKey(0)
    kx, kw, kb = jax.random.split(key, 3)

    # Batched input [T, B, input_size]: all T*B rows go through one pallas_call.
    x = jax.random.normal(kx, (timesteps, batch, input_size), dtype=jnp.float32)
    # PyTorch nn.Linear layout: weight [num_classes, input_size], bias [num_classes].
    w = jax.random.normal(kw, (num_classes, input_size), dtype=jnp.float32) * 0.1
    b = jax.random.normal(kb, (num_classes,), dtype=jnp.float32) * 0.1

    # One-time parameter prep (lives at module init in a real model).
    w_p, b_p, n_cls = prepare_qa_params(w, b)

    # Exercise the Pallas kernel explicitly (demo shapes are below the
    # production auto-dispatch threshold).
    out = qa_classifier_forward_prepared(x, w_p, b_p, n_cls)
    out = jax.block_until_ready(out)

    # Correctness check against plain JAX reference (same math as nn.Linear).
    ref = x @ w.T + b[None, None, :]
    assert out.shape == (timesteps, batch, num_classes), out.shape
    assert jnp.allclose(out, ref, atol=1e-5, rtol=1e-5)

    # Convenience wrapper: at this tiny size it auto-dispatches to fused XLA.
    out2 = jax.block_until_ready(qa_classifier_forward(x, w, b))
    assert jnp.allclose(out2, ref, atol=1e-5, rtol=1e-5)

    print("KERNEL_OK")
</pallas_src>

<mosaic_0001>
module attributes {stable_mosaic.version = 11 : i64} {
  func.func @_simple_kernel(%arg0: i32, %arg1: i32, %arg2: i32, %arg3: memref<32x32xf32, #tpu.memory_space<vmem>>, %arg4: memref<128x32xf32, #tpu.memory_space<vmem>>, %arg5: memref<1x128xf32, #tpu.memory_space<vmem>>, %arg6: memref<32x128xf32, #tpu.memory_space<vmem>>) attributes {dimension_semantics = [#tpu.dimension_semantics<parallel>, #tpu.dimension_semantics<parallel>, #tpu.dimension_semantics<arbitrary>], iteration_bounds = array<i64: 1, 1, 1>, scalar_prefetch = 0 : i64, scratch_operands = 0 : i64, tpu.core_type = #tpu.core_type<tc>, window_params = [{transform_indices = @transform_0, window_bounds = array<i64: 32, 32>}, {transform_indices = @transform_1, window_bounds = array<i64: 128, 32>}, {transform_indices = @transform_2, window_bounds = array<i64: 1, 128>}, {transform_indices = @transform_3, window_bounds = array<i64: 32, 128>}]} {
    %c0 = arith.constant 0 : index
    %c0_0 = arith.constant 0 : index
    %0 = vector.load %arg3[%c0, %c0_0] : memref<32x32xf32, #tpu.memory_space<vmem>>, vector<32x32xf32>
    %c0_1 = arith.constant 0 : index
    %c0_2 = arith.constant 0 : index
    %1 = vector.load %arg4[%c0_1, %c0_2] : memref<128x32xf32, #tpu.memory_space<vmem>>, vector<128x32xf32>
    %cst = arith.constant dense<0.000000e+00> : vector<32x128xf32>
    %2 = tpu.matmul %0, %1, %cst {dimension_numbers = #tpu.dot_dimension_numbers<[1], [1], [0], [0], [0, 0, 1, 0], [], []>} : vector<32x32xf32>, vector<128x32xf32>, vector<32x128xf32> -> vector<32x128xf32>
    %c0_3 = arith.constant 0 : index
    %c0_4 = arith.constant 0 : index
    %3 = vector.load %arg5[%c0_3, %c0_4] : memref<1x128xf32, #tpu.memory_space<vmem>>, vector<1x128xf32>
    %4 = vector.broadcast %3 : vector<1x128xf32> to vector<32x128xf32>
    %5 = arith.addf %2, %4 : vector<32x128xf32>
    %c0_5 = arith.constant 0 : index
    %c0_6 = arith.constant 0 : index
    %6 = vector.load %arg6[%c0_5, %c0_6] : memref<32x128xf32, #tpu.memory_space<vmem>>, vector<32x128xf32>
    tpu.vector_store %arg6[%c0_5, %c0_6], %5 {strides = array<i32>} : memref<32x128xf32, #tpu.memory_space<vmem>>, vector<32x128xf32>,
    return
  }
  func.func @transform_0(%arg0: i32, %arg1: i32, %arg2: i32) -> (i32, i32) {
    %c0_i32 = arith.constant 0 : i32
    return %arg1, %arg2 : i32, i32
  }
  func.func @transform_1(%arg0: i32, %arg1: i32, %arg2: i32) -> (i32, i32) {
    %c0_i32 = arith.constant 0 : i32
    return %arg0, %arg2 : i32, i32
  }
  func.func @transform_2(%arg0: i32, %arg1: i32, %arg2: i32) -> (i32, i32) {
    %c0_i32 = arith.constant 0 : i32
    %c0_i32_0 = arith.constant 0 : i32
    return %c0_i32, %arg0 : i32, i32
  }
  func.func @transform_3(%arg0: i32, %arg1: i32, %arg2: i32) -> (i32, i32) {
    %c0_i32 = arith.constant 0 : i32
    return %arg1, %arg0 : i32, i32
  }
}

</mosaic_0001>

<llo_original>
// kernel: tpu_custom_call.1
$region0: #{tpu_custom_call.1}
  #allocation0 [shape = 'u32[]', space=smem, size = 0x4, offset = 0x4, fixed_abs, tag = 'smem constant byte address 0x4 - core index']
  #allocation1 [shape = 'u32[72,128]{1,0:T(1,128)}', space=vmem, size = 0x9000, scoped, tag = 'internal scratch']
  %s0 = inlined_call_operand.vmem [shape: f32[32,32], index: 0, kind: input, shape index: {}]
  %s1 = inlined_call_operand.vmem [shape: f32[128,32], index: 1, kind: input, shape index: {}]
  %s2 = inlined_call_operand.vmem [shape: f32[1,128], index: 2, kind: input, shape index: {}]
  %s3 = inlined_call_operand.hbm [shape: f32[32,128], index: 3, kind: output, shape index: {}]
  %s4 = sld [smem:[#allocation0]]
  $region22: #{tpu_custom_call.1} parent=0
    _
  %s6 = ssub.s32 1, %s4
  %s7 = scalar_select 0, %s6, %s4
  $region1: #{tpu_custom_call.1} parent=0
    #allocation2 [shape = 'u8[16384]{0}', space=vmem, size = 0x4000, scoped, tag = 'output window, operand 0, single buffered']
    #allocation3 [shape = 's32[1]{0}', space=sflag, size = 0x4, scoped, tag = 'scoped memory for tpu_custom_call.1']
    %8 = vsyncpa [#allocation3], 0
    // Predicated region
    $region2: #{tpu_custom_call.1} parent=1 // pred_check
      _
    $region3: #{tpu_custom_call.1} parent=1 // pred_check_branch
      %10 = sbr.rel (0) target = $region5
    $region4: #{tpu_custom_call.1} parent=1 // pred_region
      _
    $region5: #{tpu_custom_call.1} parent=1 // pred_fallthru
      _
    // Predicated region
    $region6: #{tpu_custom_call.1} parent=1 // pred_check
      _
    $region7: #{tpu_custom_call.1} parent=1 // pred_check_branch
      %12 = sbr.rel (0) target = $region9
    $region8: #{tpu_custom_call.1} parent=1 // pred_region
      _
    $region9: #{tpu_custom_call.1} parent=1 // pred_fallthru
      _
    // Predicated region
    $region10: #{tpu_custom_call.1} parent=1 // pred_check
      _
    $region11: #{tpu_custom_call.1} parent=1 // pred_check_branch
      %14 = sbr.rel (0) target = $region13
    $region12: #{tpu_custom_call.1} parent=1 // pred_region
      _
    $region13: #{tpu_custom_call.1} parent=1 // pred_fallthru
      _
    %v15 = vld [vmem:[%s0] sm:$0xff]
    %v16 = vld [vmem:[%s0 + $0x8] sm:$0xff]
    %v17 = vld [vmem:[%s0 + $0x10] sm:$0xff]
    %v18 = vld [vmem:[%s0 + $0x18] sm:$0xff]
    %v19 = vld [vmem:[%s1] sm:$0xff]
    %v20 = vld [vmem:[%s1 + $0x8] sm:$0xff]
    %v21 = vld [vmem:[%s1 + $0x10] sm:$0xff]
    %v22 = vld [vmem:[%s1 + $0x18] sm:$0xff]
    %v23 = vld [vmem:[%s1 + $0x20] sm:$0xff]
    %v24 = vld [vmem:[%s1 + $0x28] sm:$0xff]
    %v25 = vld [vmem:[%s1 + $0x30] sm:$0xff]
    %v26 = vld [vmem:[%s1 + $0x38] sm:$0xff]
    %v27 = vld [vmem:[%s1 + $0x40] sm:$0xff]
    %v28 = vld [vmem:[%s1 + $0x48] sm:$0xff]
    %v29 = vld [vmem:[%s1 + $0x50] sm:$0xff]
    %v30 = vld [vmem:[%s1 + $0x58] sm:$0xff]
    %v31 = vld [vmem:[%s1 + $0x60] sm:$0xff]
    %v32 = vld [vmem:[%s1 + $0x68] sm:$0xff]
    %v33 = vld [vmem:[%s1 + $0x70] sm:$0xff]
    %v34 = vld [vmem:[%s1 + $0x78] sm:$0xff]
    %v35 = vld [vmem:[%s2] sm:$0x1]
    %v37 = vperm.slane %v35, 0
    %vm39 = vcmask 261120
    %v41 = vsel %vm39, %v15, 0
    %v44 = vsel %vm39, %v16, 0
    %v47 = vsel %vm39, %v17, 0
    %v50 = vsel %vm39, %v18, 0
    %v53 = vsel %vm39, %v19, 0
    %v56 = vsel %vm39, %v20, 0
    %v59 = vsel %vm39, %v21, 0
    %v62 = vsel %vm39, %v22, 0
    %v65 = vsel %vm39, %v23, 0
    %v68 = vsel %vm39, %v24, 0
    %v71 = vsel %vm39, %v25, 0
    %v74 = vsel %vm39, %v26, 0
    %v77 = vsel %vm39, %v27, 0
    %v80 = vsel %vm39, %v28, 0
    %v83 = vsel %vm39, %v29, 0
    %v86 = vsel %vm39, %v30, 0
    %v89 = vsel %vm39, %v31, 0
    %v92 = vsel %vm39, %v32, 0
    %v95 = vsel %vm39, %v33, 0
    %v98 = vsel %vm39, %v34, 0
    %100 = vmatpush.xpose.msra.mxu0 %v98
    %101 = vmatpush.xpose.msra.mxu0 %v95
    %102 = vmatpush.xpose.msra.mxu0 %v92
    %103 = vmatpush.xpose.msra.mxu0 %v89
    %104 = vmatpush.xpose.msra.mxu0 %v86
    %105 = vmatpush.xpose.msra.mxu0 %v83
    %106 = vmatpush.xpose.msra.mxu0 %v80
    %107 = vmatpush.xpose.msra.mxu0 %v77
    %108 = vmatpush.xpose.msra.mxu0 %v74
    %109 = vmatpush.xpose.msra.mxu0 %v71
    %110 = vmatpush.xpose.msra.mxu0 %v68
    %111 = vmatpush.xpose.msra.mxu0 %v65
    %112 = vmatpush.xpose.msra.mxu0 %v62
    %113 = vmatpush.xpose.msra.mxu0 %v59
    %114 = vmatpush.xpose.msra.mxu0 %v56
    %115 = vmatpush.xpose.msra.mxu0 %v53
    %116 = vmatmul.f32.gmra.mxu0 %v41
    %v117 = vpop.f32.mrf.mxu0
    %v118 = vadd.f32 %v37, %v117
    %119 = vmatmul.f32.gmra.mxu0 %v44
    %v120 = vpop.f32.mrf.mxu0
    %v121 = vadd.f32 %v37, %v120
    %122 = vmatmul.f32.gmra.mxu0 %v47
    %v123 = vpop.f32.mrf.mxu0
    %v124 = vadd.f32 %v37, %v123
    %125 = vmatmul.f32.gmra.mxu0 %v50
    %v126 = vpop.f32.mrf.mxu0
    %v127 = vadd.f32 %v37, %v126
    %128 = vdwg.mxu0
    %129 = vst [vmem:[#allocation2] sm:$0xff] %v118
    %130 = vst [vmem:[#allocation2 + $0x8] sm:$0xff] %v121
    %131 = vst [vmem:[#allocation2 + $0x10] sm:$0xff] %v124
    %132 = vst [vmem:[#allocation2 + $0x18] sm:$0xff] %v127
    // Predicated region
    $region14: #{tpu_custom_call.1} parent=1 // pred_check
      _
    $region15: #{tpu_custom_call.1} parent=1 // pred_check_branch
      %134 = sbr.rel (0) target = $region17
    $region16: #{tpu_custom_call.1} parent=1 // pred_region
      %136 = vsyncadd [#allocation3], 0
      %s137 = sshll.u32 [#allocation2], 4
      %s138 = int_to_ptr.vmem [resolvable:$true] %s137
      %s139 = sshll.u32 %s3, 4
      %s140 = int_to_ptr.hbm [resolvable:$true] %s139
      %145 = dma.vmem_to_hbm [thread:$0]  %s138, 512, %s140, [#allocation3], 128, 128, 8
    $region17: #{tpu_custom_call.1} parent=1 // pred_fallthru
      _
    // Predicated region
    $region18: #{tpu_custom_call.1} parent=1 // pred_check
      _
    $region19: #{tpu_custom_call.1} parent=1 // pred_check_branch
      %147 = sbr.rel (0) target = $region21
    $region20: #{tpu_custom_call.1} parent=1 // pred_region
      %149 = dma.done [#allocation3], 512
    $region21: #{tpu_custom_call.1} parent=1 // pred_fallthru
      _
    %150 = vsyncpa [#allocation3], 1

</llo_original>
